<compile_context>
chip_gen: v5e
topology: v5e:2x2
jax: 0.10.0
libtpu: 0.0.40
codegen_flags: <defaults>
</compile_context>

<pallas_src>
import functools

import jax
import jax.numpy as jnp
from jax import lax
from jax.experimental import pallas as pl
from jax.experimental.pallas import tpu as pltpu


def _patch_matmul_kernel(p_ref, w_ref, o_ref):
    """p_ref: (1, K, TM) patch tile; w_ref: (OC, K) weight; o_ref: (1, OC, TM)."""
    p = p_ref[0]          # (K, TM)  -- lane-dense on the big spatial axis.
    w = w_ref[...]        # (OC, K)
    # Exact f32 MXU passes on the exact-semantics path; native bf16 otherwise.
    prec = lax.Precision.HIGHEST if p.dtype == jnp.float32 else None
    acc = lax.dot_general(
        w, p,
        dimension_numbers=(((1,), (0,)), ((), ())),   # plain W @ P, no transpose
        preferred_element_type=jnp.float32,
        precision=prec,
    )                     # (OC, TM): spatial dim stays on the lane axis.
    o_ref[0] = acc.astype(o_ref.dtype)


def _patch_matmul(patches: jax.Array, w2: jax.Array, *, out_dtype, tm: int) -> jax.Array:
    """patches: (N, K, L); w2: (OC, K) -> (N, OC, L) in out_dtype."""
    N, K, L = patches.shape
    OC = w2.shape[0]
    in_sz = patches.dtype.itemsize
    out_sz = jnp.dtype(out_dtype).itemsize

    # Per-step VMEM: double-buffered input/output blocks + resident weight.
    def step_bytes(t):
        return 2 * t * (K * in_sz + OC * out_sz) + 2 * OC * K * in_sz

    # Shrink the tile until it fits a conservative budget that works on every
    # generation (v5e default 16 MiB is raised below; v7x has 64 MiB physical).
    budget = 40 << 20
    tm_fit = max(128, (tm // 128) * 128)
    while tm_fit > 128 and step_bytes(tm_fit) > budget:
        tm_fit = max(128, ((tm_fit // 2) // 128) * 128)

    if L <= tm_fit:
        tm_eff, num_m = L, 1          # full-extent lane block (always legal)
    else:
        tm_eff = tm_fit               # multiple of 128 -> unmasked vst
        num_m = pl.cdiv(L, tm_eff)    # ragged last block: OOB input columns
                                      # only feed never-written output columns.

    # v7x megacore: guarantee >= 2 grid steps so both TensorCores get work.
    # (No effect on single-core v5e/v6e.)
    if N * num_m == 1 and L > 128:
        tm_eff = ((pl.cdiv(L, 2) + 127) // 128) * 128
        num_m = pl.cdiv(L, tm_eff)

    vmem_limit = int(min(48 << 20, max(24 << 20, step_bytes(tm_eff) + (4 << 20))))

    return pl.pallas_call(
        _patch_matmul_kernel,
        out_shape=jax.ShapeDtypeStruct((N, OC, L), out_dtype),
        grid_spec=pltpu.PrefetchScalarGridSpec(
            num_scalar_prefetch=0,
            grid=(N, num_m),
            in_specs=[
                pl.BlockSpec((1, K, tm_eff), lambda n, j: (n, 0, j)),
                pl.BlockSpec((OC, K), lambda n, j: (0, 0)),   # resident weight
            ],
            out_specs=pl.BlockSpec((1, OC, tm_eff), lambda n, j: (n, 0, j)),
        ),
        compiler_params=pltpu.CompilerParams(
            dimension_semantics=("parallel", "parallel"),
            # Let XLA pull the patchify/cast producer into the input DMA.
            allow_input_fusion=[True, True],
            vmem_limit_bytes=vmem_limit,
        ),
    )(patches, w2)


@functools.partial(jax.jit, static_argnames=("compute_dtype", "out_dtype", "tm"))
def encoder_tail_forward(x: jax.Array, weight: jax.Array, *,
                         compute_dtype=jnp.bfloat16, out_dtype=None,
                         tm: int = 1024) -> jax.Array:
    """x: (N, C, H, W); weight: (OC, C, 2, 2) (PyTorch Conv2d layout).

    Returns (N, OC, H/2, W/2), matching
    nn.Conv2d(C, OC, kernel_size=2, stride=2, bias=False)(x).
    compute_dtype=jnp.float32 -> exact module numerics (f32 output).
    Default (bf16) streams and stores bf16 for ~2x less HBM traffic.
    """
    N, C, H, W = x.shape
    OC = weight.shape[0]
    if weight.shape != (OC, C, 2, 2):
        raise ValueError(f"bad weight shape {weight.shape}")
    if H % 2 or W % 2:
        raise ValueError("H and W must be even")
    if out_dtype is None:
        out_dtype = compute_dtype
    Ho, Wo = H // 2, W // 2
    L, K = Ho * Wo, 4 * C

    # Patchify to (N, K, L) with K ordered (c, kh, kw) to match the weight
    # reshape: (N,C,Ho,2,Wo,2) -> (N,C,kh,kw,Ho,Wo) -> (N, 4C, Ho*Wo).
    # The dtype cast fuses into this same XLA pass.
    xp = x.reshape(N, C, Ho, 2, Wo, 2)
    xp = jnp.transpose(xp, (0, 1, 3, 5, 2, 4))
    patches = xp.reshape(N, K, L).astype(compute_dtype)

    # Weight: (OC, C, 2, 2) -> (OC, K); feature order (c, kh, kw) matches.
    w2 = weight.reshape(OC, K).astype(compute_dtype)

    out = _patch_matmul(patches, w2, out_dtype=out_dtype, tm=tm)  # (N, OC, L)
    # (N, OC, Ho*Wo) -> NCHW is a free reshape; no output transpose needed.
    return out.reshape(N, OC, Ho, Wo)


if __name__ == "__main__":
    def ref_conv(x, w, precision=None):
        return lax.conv_general_dilated(
            x, w, window_strides=(2, 2), padding="VALID",
            dimension_numbers=("NCHW", "OIHW", "NCHW"), precision=precision)

    key = jax.random.PRNGKey(0)
    kx, kw, kx2, kx3 = jax.random.split(key, 4)

    # --- Case 1: exact-semantics path (f32 compute, f32 output).
    planes = 4
    N, C, H, W = 2, planes, 16, 16
    x = jax.random.normal(kx, (N, C, H, W), dtype=jnp.float32)
    weight = jax.random.normal(kw, (2 * planes, planes, 2, 2), dtype=jnp.float32) * 0.1

    out_f32 = jax.block_until_ready(
        encoder_tail_forward(x, weight, compute_dtype=jnp.float32))
    ref = ref_conv(x, weight, precision=lax.Precision.HIGHEST)
    assert out_f32.shape == (N, 2 * planes, H // 2, W // 2)
    assert out_f32.dtype == jnp.float32
    assert jnp.allclose(out_f32, ref, atol=1e-4, rtol=1e-4)

    # --- Case 2: fast path (bf16 streaming + bf16 output).
    out_fast = jax.block_until_ready(encoder_tail_forward(x, weight))
    ref_bf16 = ref_conv(x.astype(jnp.bfloat16).astype(jnp.float32),
                        weight.astype(jnp.bfloat16).astype(jnp.float32),
                        precision=lax.Precision.HIGHEST)
    assert out_fast.shape == (N, 2 * planes, H // 2, W // 2)
    assert out_fast.dtype == jnp.bfloat16
    assert jnp.allclose(out_fast.astype(jnp.float32), ref_bf16, atol=3e-2, rtol=3e-2)
    assert jnp.allclose(out_fast.astype(jnp.float32), ref, atol=6e-2, rtol=6e-2)

    # --- Case 3: ragged spatial tiling (L % tm_eff != 0), exact f32.
    #     L = 24*24 = 576 with tm=256 -> 3 tiles, last one ragged (64 valid lanes).
    N3, C3, H3, W3 = 1, 4, 48, 48
    x3 = jax.random.normal(kx2, (N3, C3, H3, W3), dtype=jnp.float32)
    w3 = jax.random.normal(kw, (2 * C3, C3, 2, 2), dtype=jnp.float32) * 0.1
    out3 = jax.block_until_ready(
        encoder_tail_forward(x3, w3, compute_dtype=jnp.float32, tm=256))
    ref3 = ref_conv(x3, w3, precision=lax.Precision.HIGHEST)
    assert jnp.allclose(out3, ref3, atol=1e-4, rtol=1e-4)

    # --- Case 4: single image, L <= tm -> grid is force-split into >=2 steps
    #     (v7x megacore path), exact f32.  L = 16*32 = 512 -> 2 tiles of 256.
    N4, C4, H4, W4 = 1, 4, 32, 64
    x4 = jax.random.normal(kx3, (N4, C4, H4, W4), dtype=jnp.float32)
    out4 = jax.block_until_ready(
        encoder_tail_forward(x4, w3, compute_dtype=jnp.float32))
    ref4 = ref_conv(x4, w3, precision=lax.Precision.HIGHEST)
    assert jnp.allclose(out4, ref4, atol=1e-4, rtol=1e-4)

    print("KERNEL_OK")
</pallas_src>

<mosaic_0001>
module attributes {stable_mosaic.version = 11 : i64} {
  func.func @_patch_matmul_kernel(%arg0: i32, %arg1: i32, %arg2: memref<1x16x64xf32, #tpu.memory_space<vmem>>, %arg3: memref<8x16xf32, #tpu.memory_space<vmem>>, %arg4: memref<1x8x64xf32, #tpu.memory_space<vmem>>) attributes {dimension_semantics = [#tpu.dimension_semantics<parallel>, #tpu.dimension_semantics<parallel>], iteration_bounds = array<i64: 2, 1>, scalar_prefetch = 0 : i64, scratch_operands = 0 : i64, tpu.core_type = #tpu.core_type<tc>, window_params = [{transform_indices = @transform_0, window_bounds = array<i64: 1, 16, 64>}, {pipeline_mode = #tpu.pipeline_mode<synchronous>, transform_indices = @transform_1, window_bounds = array<i64: 8, 16>}, {transform_indices = @transform_2, window_bounds = array<i64: 1, 8, 64>}]} {
    %c0 = arith.constant 0 : index
    %c0_0 = arith.constant 0 : index
    %c0_1 = arith.constant 0 : index
    %0 = vector.load %arg2[%c0, %c0_0, %c0_1] : memref<1x16x64xf32, #tpu.memory_space<vmem>>, vector<1x16x64xf32>
    %1 = vector.shape_cast %0 : vector<1x16x64xf32> to vector<16x64xf32>
    %c0_2 = arith.constant 0 : index
    %c0_3 = arith.constant 0 : index
    %2 = vector.load %arg3[%c0_2, %c0_3] : memref<8x16xf32, #tpu.memory_space<vmem>>, vector<8x16xf32>
    %cst = arith.constant dense<0.000000e+00> : vector<8x64xf32>
    %3 = tpu.matmul %2, %1, %cst {dimension_numbers = #tpu.dot_dimension_numbers<[1], [0], [0], [1], [0, 0, 1, 1], [], []>, precision = #tpu.contract_precision<fp32>} : vector<8x16xf32>, vector<16x64xf32>, vector<8x64xf32> -> vector<8x64xf32>
    %c0_4 = arith.constant 0 : index
    %c0_5 = arith.constant 0 : index
    %c0_6 = arith.constant 0 : index
    %4 = vector.load %arg4[%c0_4, %c0_5, %c0_6] : memref<1x8x64xf32, #tpu.memory_space<vmem>>, vector<1x8x64xf32>
    %5 = vector.shape_cast %4 : vector<1x8x64xf32> to vector<8x64xf32>
    %6 = vector.shape_cast %3 : vector<8x64xf32> to vector<1x8x64xf32>
    tpu.vector_store %arg4[%c0_4, %c0_5, %c0_6], %6 {strides = array<i32>} : memref<1x8x64xf32, #tpu.memory_space<vmem>>, vector<1x8x64xf32>,
    return
  }
  func.func @transform_0(%arg0: i32, %arg1: i32) -> (i32, i32, i32) {
    %c0_i32 = arith.constant 0 : i32
    %c0_i32_0 = arith.constant 0 : i32
    return %arg0, %c0_i32, %arg1 : i32, i32, i32
  }
  func.func @transform_1(%arg0: i32, %arg1: i32) -> (i32, i32) {
    %c0_i32 = arith.constant 0 : i32
    %c0_i32_0 = arith.constant 0 : i32
    %c0_i32_1 = arith.constant 0 : i32
    return %c0_i32, %c0_i32_0 : i32, i32
  }
  func.func @transform_2(%arg0: i32, %arg1: i32) -> (i32, i32, i32) {
    %c0_i32 = arith.constant 0 : i32
    %c0_i32_0 = arith.constant 0 : i32
    return %arg0, %c0_i32, %arg1 : i32, i32, i32
  }
}

</mosaic_0001>

<llo_original>
// kernel: encoder_tail_forward.1
$region0: #{encoder_tail_forward.1}
  #allocation0 [shape = 'u32[]', space=smem, size = 0x4, offset = 0x4, fixed_abs, tag = 'smem constant byte address 0x4 - core index']
  #allocation1 [shape = 'u32[72,128]{1,0:T(1,128)}', space=vmem, size = 0x9000, scoped, tag = 'internal scratch']
  %s0 = inlined_call_operand.vmem [shape: f32[2,16,64], index: 0, kind: input, shape index: {}]
  %s1 = inlined_call_operand.vmem [shape: f32[8,16], index: 1, kind: input, shape index: {}]
  %s2 = inlined_call_operand.vmem [shape: f32[2,8,64], index: 2, kind: output, shape index: {}]
  %s3 = sld [smem:[#allocation0]]
  $region41: #{encoder_tail_forward.1} parent=0
    _
  %s5 = ssub.s32 1, %s3
  %s6 = scalar_select 0, %s5, %s3
  loop: start=0, step=1, limit=4
  $region2: #{encoder_tail_forward.1} parent=0 // loop_pre_header
    _
  $region3: #{encoder_tail_forward.1} parent=0 // loop_header
    %s8 = sphi 0, %s12
    %p9 = scmp.ge.s32.totalorder %s8, 4
    %s15 = sphi 0, %s27
    %s16 = sphi 0, %s23
    %s17 = sphi 0, %s15
    %s18 = sphi 0, %s16
    %s19 = sphi 0, %s17
    %s20 = sphi 0, %s18
    %s32 = sphi 0, %s34
    %s35 = sphi 0, %s32
    %s36 = sphi 0, %s35
    %s52 = sphi 0, %s36
    %s56 = sphi 0, %s56
    %s58 = sphi 0, %s56
    %s59 = sphi 0, %s58
    %s73 = sphi 0, %s59
    %s81 = sphi 0, %s83
    %s84 = sphi 0, %s81
    %s85 = sphi 0, %s84
    %s101 = sphi 0, %s85
  $region4: #{encoder_tail_forward.1} parent=0 // loop_header_branch
    %11 = sbr.rel (%p9) target = $region8
  $region5: #{encoder_tail_forward.1} parent=0 // loop_body
    %s13 = ssub.s32 %s8, 1
    %s14 = ssub.s32 %s8, 2
    %s21 = sadd.s32 1, %s16
    %p22 = scmp.ge.s32.totalorder %s21, 1
    %s23 = scalar_select %p22, 0, %s21
    %s24 = sadd.s32 1, %s15
    %s25 = scalar_select %p22, %s24, %s15
    %p26 = scmp.ge.s32.totalorder %s25, 2
    %s27 = scalar_select %p26, 0, %s25
    %s28 = ssub.s32 %s15, %s27
    %s29 = ssub.s32 %s16, %s23
    %s30 = sor.u32 %s28, %s29
    %p31 = scmp.eq.s32.totalorder %s30, 0
    %s33 = sadd.s32 %s32, 1
    %s34 = scalar_select %p31, %s32, %s33
    %p37 = pneg %p31
    %p38 = scmp.eq.s32.totalorder %s8, 1
    %p39 = por %p37, %p38
    %p40 = scmp.ne.s32.totalorder %s32, %s35
    %p41 = scmp.eq.s32.totalorder %s8, 0
    %p42 = por %p40, %p41
    %p43 = scmp.ne.s32.totalorder %s32, %s35
    %p44 = scmp.eq.s32.totalorder %s13, 1
    %p45 = por %p43, %p44
    %p46 = scmp.ne.s32.totalorder %s35, %s36
    %p47 = scmp.eq.s32.totalorder %s13, 0
    %p48 = por %p46, %p47
    %p49 = scmp.ne.s32.totalorder %s35, %s36
    %p50 = scmp.eq.s32.totalorder %s14, 1
    %p51 = por %p49, %p50
    %p53 = scmp.ne.s32.totalorder %s36, %s52
    %p54 = scmp.eq.s32.totalorder %s14, 0
    %p55 = por %p53, %p54
    %s57 = sadd.s32 %s56, 1
    %p60 = scmp.eq.s32.totalorder %s8, 1
    %p61 = scmp.ne.s32.totalorder %s56, %s58
    %p62 = scmp.eq.s32.totalorder %s8, 0
    %p63 = por %p61, %p62
    %p64 = scmp.ne.s32.totalorder %s56, %s58
    %p65 = scmp.eq.s32.totalorder %s13, 1
    %p66 = por %p64, %p65
    %p67 = scmp.ne.s32.totalorder %s58, %s59
    %p68 = scmp.eq.s32.totalorder %s13, 0
    %p69 = por %p67, %p68
    %p70 = scmp.ne.s32.totalorder %s58, %s59
    %p71 = scmp.eq.s32.totalorder %s14, 1
    %p72 = por %p70, %p71
    %p74 = scmp.ne.s32.totalorder %s59, %s73
    %p75 = scmp.eq.s32.totalorder %s14, 0
    %p76 = por %p74, %p75
    %s77 = ssub.s32 %s15, %s27
    %s78 = ssub.s32 %s16, %s23
    %s79 = sor.u32 %s77, %s78
    %p80 = scmp.eq.s32.totalorder %s79, 0
    %s82 = sadd.s32 %s81, 1
    %s83 = scalar_select %p80, %s81, %s82
    %p86 = pneg %p80
    %p87 = scmp.eq.s32.totalorder %s8, 1
    %p88 = por %p86, %p87
    %p89 = scmp.ne.s32.totalorder %s81, %s84
    %p90 = scmp.eq.s32.totalorder %s8, 0
    %p91 = por %p89, %p90
    %p92 = scmp.ne.s32.totalorder %s81, %s84
    %p93 = scmp.eq.s32.totalorder %s13, 1
    %p94 = por %p92, %p93
    %p95 = scmp.ne.s32.totalorder %s84, %s85
    %p96 = scmp.eq.s32.totalorder %s13, 0
    %p97 = por %p95, %p96
    %p98 = scmp.ne.s32.totalorder %s84, %s85
    %p99 = scmp.eq.s32.totalorder %s14, 1
    %p100 = por %p98, %p99
    %p102 = scmp.ne.s32.totalorder %s85, %s101
    %p103 = scmp.eq.s32.totalorder %s14, 0
    %p104 = por %p102, %p103
    %p105 = scmp.le.s32.totalorder 1, %s8
    %p106 = scmp.lt.s32.totalorder %s8, 3
    %p107 = pnand %p105, %p106
    %p108 = pneg %p107
    // Predicated region
    $region9: #{encoder_tail_forward.1} parent=5 // pred_check
      _
    $region10: #{encoder_tail_forward.1} parent=5 // pred_check_branch
      %110 = sbr.rel (%p107) target = $region12
    $region11: #{encoder_tail_forward.1} parent=5 // pred_region
      %s111 = ssub.s32 %s8, 1
      // Predicated region
      $region13: #{encoder_tail_forward.1} parent=11 // pred_check
        %p112 = pneg %p69
      $region14: #{encoder_tail_forward.1} parent=11 // pred_check_branch
        %114 = sbr.rel (%p112) target = $region16
      $region15: #{encoder_tail_forward.1} parent=11 // pred_region
        _
      $region16: #{encoder_tail_forward.1} parent=11 // pred_fallthru
        _
    $region12: #{encoder_tail_forward.1} parent=5 // pred_fallthru
      _
    %p115 = scmp.lt.s32.totalorder %s8, 2
    // Predicated region
    $region17: #{encoder_tail_forward.1} parent=5 // pred_check
      %p116 = pneg %p115
    $region18: #{encoder_tail_forward.1} parent=5 // pred_check_branch
      %118 = sbr.rel (%p116) target = $region20
    $region19: #{encoder_tail_forward.1} parent=5 // pred_region
      // Predicated region
      $region21: #{encoder_tail_forward.1} parent=19 // pred_check
        %p119 = pneg %p42
      $region22: #{encoder_tail_forward.1} parent=19 // pred_check_branch
        %121 = sbr.rel (%p119) target = $region24
      $region23: #{encoder_tail_forward.1} parent=19 // pred_region
        %p122 = scmp.lt.s32.totalorder %s15, 1
        %s123 = scalar_select %p122, %s15, 1
        %p124 = scmp.lt.s32.totalorder %s16, 0
        %s125 = scalar_select %p124, %s16, 0
        %s126 = smul.addr %s123, 2
        %s127 = sadd.s32 %s125, %s126
        %s128 = smul.addr %s127, 8
        %s129 = scalar_lea.vmem %s0, %s128
      $region24: #{encoder_tail_forward.1} parent=19 // pred_fallthru
        _
    $region20: #{encoder_tail_forward.1} parent=5 // pred_fallthru
      _
    %p130 = scmp.le.s32.totalorder 1, %s8
    %p131 = scmp.lt.s32.totalorder %s8, 3
    %p132 = pnand %p130, %p131
    %p133 = pneg %p132
    // Predicated region
    $region25: #{encoder_tail_forward.1} parent=5 // pred_check
      _
    $region26: #{encoder_tail_forward.1} parent=5 // pred_check_branch
      %135 = sbr.rel (%p132) target = $region28
    $region27: #{encoder_tail_forward.1} parent=5 // pred_region
      %s136 = ssub.s32 %s8, 1
      %p137 = scmp.lt.s32.totalorder %s17, 1
      %s138 = scalar_select %p137, %s17, 1
      %p139 = scmp.lt.s32.totalorder %s18, 0
      %s140 = scalar_select %p139, %s18, 0
      %s141 = smul.addr %s138, 2
      %s142 = sadd.s32 %s140, %s141
      %s143 = smul.addr %s142, 8
      %s144 = scalar_lea.vmem %s0, %s143
      %p145 = pneg %p48
      %p146 = pneg %p45
      %p147 = pneg %p69
      %p148 = pneg %p66
      %p149 = pneg %p97
      %p150 = pneg %p94
      %p151 = scmp.lt.s32.totalorder %s17, 1
      %s152 = scalar_select %p151, %s17, 1
      %p153 = scmp.lt.s32.totalorder %s18, 0
      %s154 = scalar_select %p153, %s18, 0
      %s155 = sadd.s32 %s154, %s152
      %s156 = smul.addr %s155, 8
      %s157 = scalar_lea.vmem %s2, %s156
      %p158 = scmp.lt.s32.totalorder %s17, 1
      %s159 = scalar_select %p158, %s17, 1
      %p160 = scmp.lt.s32.totalorder %s18, 0
      %s161 = scalar_select %p160, %s18, 0
      %s162 = smul.addr %s159, 2
      %s163 = sadd.s32 %s161, %s162
      %s164 = smul.addr %s163, 8
      %s165 = scalar_lea.vmem %s0, %s164
      %p166 = scmp.lt.s32.totalorder %s17, 1
      %s167 = scalar_select %p166, %s17, 1
      %p168 = scmp.lt.s32.totalorder %s18, 0
      %s169 = scalar_select %p168, %s18, 0
      %s170 = sadd.s32 %s169, %s167
      %s171 = smul.addr %s170, 8
      %s172 = scalar_lea.vmem %s2, %s171
      %v173 = vld [vmem:[%s165] sm:$0xff]
      %v174 = vld [vmem:[%s165 + $0x8] sm:$0xff]
      %v175 = vld [vmem:[%s1] sm:$0xff]
      %vm176 = vcmask 130048
      %v178 = vsel %vm176, %v175, 0
      %180 = vmatpush.msra.mxu0 0.0
      %181 = vmatpush.msra.mxu0 0.0
      %182 = vmatpush.msra.mxu0 0.0
      %183 = vmatpush.msra.mxu0 0.0
      %184 = vmatpush.msra.mxu0 0.0
      %185 = vmatpush.msra.mxu0 0.0
      %186 = vmatpush.msra.mxu0 0.0
      %187 = vmatpush.msra.mxu0 0.0
      %188 = vmatpush.msra.mxu0 0.0
      %189 = vmatpush.msra.mxu0 0.0
      %190 = vmatpush.msra.mxu0 0.0
      %191 = vmatpush.msra.mxu0 0.0
      %192 = vmatpush.msra.mxu0 0.0
      %193 = vmatpush.msra.mxu0 0.0
      %v194 = vand.u32 %v174, 4294901760
      %195 = vmatpush.msra.mxu0 %v194
      %v196 = vand.u32 %v173, 4294901760
      %197 = vmatpush.msra.mxu0 %v196
      %v198 = vand.u32 %v178, 4294901760
      %v199 = vsub.f32 %v178, %v198
      %v200 = vand.u32 %v199, 4294901760
      %v201 = vsub.f32 %v199, %v200
      %v202 = vand.u32 %v201, 4294901760
      %203 = vmatmul.f32.gmra.mxu0 %v202
      %v204 = vpop.f32.mrf.mxu0
      %v205 = vadd.f32 0.0, %v204
      %206 = vdwg.mxu0
      %207 = vmatpush.msra.mxu0 0.0
      %208 = vmatpush.msra.mxu0 0.0
      %209 = vmatpush.msra.mxu0 0.0
      %210 = vmatpush.msra.mxu0 0.0
      %211 = vmatpush.msra.mxu0 0.0
      %212 = vmatpush.msra.mxu0 0.0
      %213 = vmatpush.msra.mxu0 0.0
      %214 = vmatpush.msra.mxu0 0.0
      %215 = vmatpush.msra.mxu0 0.0
      %216 = vmatpush.msra.mxu0 0.0
      %217 = vmatpush.msra.mxu0 0.0
      %218 = vmatpush.msra.mxu0 0.0
      %219 = vmatpush.msra.mxu0 0.0
      %220 = vmatpush.msra.mxu0 0.0
      %v221 = vand.u32 %v174, 4294901760
      %v222 = vsub.f32 %v174, %v221
      %v223 = vand.u32 %v222, 4294901760
      %v224 = vsub.f32 %v222, %v223
      %v225 = vand.u32 %v224, 4294901760
      %226 = vmatpush.msra.mxu0 %v225
      %v227 = vand.u32 %v173, 4294901760
      %v228 = vsub.f32 %v173, %v227
      %v229 = vand.u32 %v228, 4294901760
      %v230 = vsub.f32 %v228, %v229
      %v231 = vand.u32 %v230, 4294901760
      %232 = vmatpush.msra.mxu0 %v231
      %v233 = vand.u32 %v178, 4294901760
      %234 = vmatmul.f32.gmra.mxu0 %v233
      %v235 = vpop.f32.mrf.mxu0
      %v236 = vadd.f32 %v205, %v235
      %237 = vdwg.mxu0
      %238 = vmatpush.msra.mxu0 0.0
      %239 = vmatpush.msra.mxu0 0.0
      %240 = vmatpush.msra.mxu0 0.0
      %241 = vmatpush.msra.mxu0 0.0
      %242 = vmatpush.msra.mxu0 0.0
      %243 = vmatpush.msra.mxu0 0.0
      %244 = vmatpush.msra.mxu0 0.0
      %245 = vmatpush.msra.mxu0 0.0
      %246 = vmatpush.msra.mxu0 0.0
      %247 = vmatpush.msra.mxu0 0.0
      %248 = vmatpush.msra.mxu0 0.0
      %249 = vmatpush.msra.mxu0 0.0
      %250 = vmatpush.msra.mxu0 0.0
      %251 = vmatpush.msra.mxu0 0.0
      %v252 = vand.u32 %v174, 4294901760
      %v253 = vsub.f32 %v174, %v252
      %254 = vmatpush.msra.mxu0 %v253
      %v255 = vand.u32 %v173, 4294901760
      %v256 = vsub.f32 %v173, %v255
      %257 = vmatpush.msra.mxu0 %v256
      %v258 = vand.u32 %v178, 4294901760
      %v259 = vsub.f32 %v178, %v258
      %260 = vmatmul.f32.gmra.mxu0 %v259
      %v261 = vpop.f32.mrf.mxu0
      %v262 = vadd.f32 %v236, %v261
      %263 = vdwg.mxu0
      %264 = vmatpush.msra.mxu0 0.0
      %265 = vmatpush.msra.mxu0 0.0
      %266 = vmatpush.msra.mxu0 0.0
      %267 = vmatpush.msra.mxu0 0.0
      %268 = vmatpush.msra.mxu0 0.0
      %269 = vmatpush.msra.mxu0 0.0
      %270 = vmatpush.msra.mxu0 0.0
      %271 = vmatpush.msra.mxu0 0.0
      %272 = vmatpush.msra.mxu0 0.0
      %273 = vmatpush.msra.mxu0 0.0
      %274 = vmatpush.msra.mxu0 0.0
      %275 = vmatpush.msra.mxu0 0.0
      %276 = vmatpush.msra.mxu0 0.0
      %277 = vmatpush.msra.mxu0 0.0
      %v278 = vand.u32 %v174, 4294901760
      %279 = vmatpush.msra.mxu0 %v278
      %v280 = vand.u32 %v173, 4294901760
      %281 = vmatpush.msra.mxu0 %v280
      %v282 = vand.u32 %v178, 4294901760
      %v283 = vsub.f32 %v178, %v282
      %v284 = vand.u32 %v283, 4294901760
      %285 = vmatmul.f32.gmra.mxu0 %v284
      %v286 = vpop.f32.mrf.mxu0
      %v287 = vadd.f32 %v262, %v286
      %288 = vdwg.mxu0
      %289 = vmatpush.msra.mxu0 0.0
      %290 = vmatpush.msra.mxu0 0.0
      %291 = vmatpush.msra.mxu0 0.0
      %292 = vmatpush.msra.mxu0 0.0
      %293 = vmatpush.msra.mxu0 0.0
      %294 = vmatpush.msra.mxu0 0.0
      %295 = vmatpush.msra.mxu0 0.0
      %296 = vmatpush.msra.mxu0 0.0
      %297 = vmatpush.msra.mxu0 0.0
      %298 = vmatpush.msra.mxu0 0.0
      %299 = vmatpush.msra.mxu0 0.0
      %300 = vmatpush.msra.mxu0 0.0
      %301 = vmatpush.msra.mxu0 0.0
      %302 = vmatpush.msra.mxu0 0.0
      %v303 = vand.u32 %v174, 4294901760
      %v304 = vsub.f32 %v174, %v303
      %v305 = vand.u32 %v304, 4294901760
      %306 = vmatpush.msra.mxu0 %v305
      %v307 = vand.u32 %v173, 4294901760
      %v308 = vsub.f32 %v173, %v307
      %v309 = vand.u32 %v308, 4294901760
      %310 = vmatpush.msra.mxu0 %v309
      %v311 = vand.u32 %v178, 4294901760
      %312 = vmatmul.f32.gmra.mxu0 %v311
      %v313 = vpop.f32.mrf.mxu0
      %v314 = vadd.f32 %v287, %v313
      %315 = vdwg.mxu0
      %316 = vmatpush.msra.mxu0 0.0
      %317 = vmatpush.msra.mxu0 0.0
      %318 = vmatpush.msra.mxu0 0.0
      %319 = vmatpush.msra.mxu0 0.0
      %320 = vmatpush.msra.mxu0 0.0
      %321 = vmatpush.msra.mxu0 0.0
      %322 = vmatpush.msra.mxu0 0.0
      %323 = vmatpush.msra.mxu0 0.0
      %324 = vmatpush.msra.mxu0 0.0
      %325 = vmatpush.msra.mxu0 0.0
      %326 = vmatpush.msra.mxu0 0.0
      %327 = vmatpush.msra.mxu0 0.0
      %328 = vmatpush.msra.mxu0 0.0
      %329 = vmatpush.msra.mxu0 0.0
      %v330 = vand.u32 %v174, 4294901760
      %331 = vmatpush.msra.mxu0 %v330
      %v332 = vand.u32 %v173, 4294901760
      %333 = vmatpush.msra.mxu0 %v332
      %v334 = vand.u32 %v178, 4294901760
      %335 = vmatmul.f32.gmra.mxu0 %v334
      %v336 = vpop.f32.mrf.mxu0
      %v337 = vadd.f32 %v314, %v336
      %338 = vdwg.mxu0
      %vm339 = vcmask 523264
      %340 = vst.msk [vmem:[%s172] sm:$0xff] %vm339, %v337
      %p341 = scmp.lt.s32.totalorder %s17, 1
      %s342 = scalar_select %p341, %s17, 1
      %p343 = scmp.lt.s32.totalorder %s18, 0
      %s344 = scalar_select %p343, %s18, 0
      %s345 = sadd.s32 %s344, %s342
      %s346 = smul.addr %s345, 8
      %s347 = scalar_lea.vmem %s2, %s346
      // Predicated region
      $region29: #{encoder_tail_forward.1} parent=27 // pred_check
        %p348 = pneg %p94
      $region30: #{encoder_tail_forward.1} parent=27 // pred_check_branch
        %350 = sbr.rel (%p348) target = $region32
      $region31: #{encoder_tail_forward.1} parent=27 // pred_region
        _
      $region32: #{encoder_tail_forward.1} parent=27 // pred_fallthru
        _
    $region28: #{encoder_tail_forward.1} parent=5 // pred_fallthru
      _
    %p351 = scmp.le.s32.totalorder 2, %s8
    // Predicated region
    $region33: #{encoder_tail_forward.1} parent=5 // pred_check
      %p352 = pneg %p351
    $region34: #{encoder_tail_forward.1} parent=5 // pred_check_branch
      %354 = sbr.rel (%p352) target = $region36
    $region35: #{encoder_tail_forward.1} parent=5 // pred_region
      %s355 = ssub.s32 %s8, 2
      // Predicated region
      $region37: #{encoder_tail_forward.1} parent=35 // pred_check
        %p356 = pneg %p100
      $region38: #{encoder_tail_forward.1} parent=35 // pred_check_branch
        %358 = sbr.rel (%p356) target = $region40
      $region39: #{encoder_tail_forward.1} parent=35 // pred_region
        %p359 = scmp.lt.s32.totalorder %s19, 1
        %s360 = scalar_select %p359, %s19, 1
        %p361 = scmp.lt.s32.totalorder %s20, 0
        %s362 = scalar_select %p361, %s20, 0
        %s363 = sadd.s32 %s362, %s360
        %s364 = smul.addr %s363, 8
        %s365 = scalar_lea.vmem %s2, %s364
      $region40: #{encoder_tail_forward.1} parent=35 // pred_fallthru
        _
    $region36: #{encoder_tail_forward.1} parent=5 // pred_fallthru
      _
  $region6: #{encoder_tail_forward.1} parent=0 // loop_footer
    %s12 = sadd.s32 1, %s8
  $region7: #{encoder_tail_forward.1} parent=0 // loop_footer_branch
    %7 = sbr.rel target = $region3
  $region8: #{encoder_tail_forward.1} parent=0 // loop_exit
    _

</llo_original>
